<compile_context>
chip_gen: v6e
topology: v6e:2x2x1
jax: 0.10.0
libtpu: 0.0.40
codegen_flags: <defaults>
</compile_context>

<pallas_src>
import functools

import jax
import jax.numpy as jnp
from jax.experimental import pallas as pl
from jax.experimental.pallas import tpu as pltpu

LANE = 128          # lane-padded width of the final (softmax) layer
_NEG_PAD = -1e30    # bias for padding lanes: exp(-1e30 - m) == 0.0 in f32


def _round_up(n, m):
    return (n + m - 1) // m * m


def _cdiv(a, b):
    return (a + b - 1) // b


def _policy_kernel(x_ref, w1_ref, b1_ref, w2_ref, b2_ref, w3_ref, b3_ref, o_ref):
    # MXU matmuls in bf16, accumulate + elementwise math in f32.
    x = x_ref[...].astype(jnp.bfloat16)

    # f1 + relu
    h1 = jnp.dot(x, w1_ref[...], preferred_element_type=jnp.float32) + b1_ref[...]
    h1 = jnp.maximum(h1, 0.0)

    # f2 + relu
    h2 = jnp.dot(h1.astype(jnp.bfloat16), w2_ref[...],
                 preferred_element_type=jnp.float32) + b2_ref[...]
    h2 = jnp.maximum(h2, 0.0)

    # action_probs (lane-padded to 128) + numerically stable softmax.
    logits = jnp.dot(h2.astype(jnp.bfloat16), w3_ref[...],
                     preferred_element_type=jnp.float32) + b3_ref[...]
    m = jnp.max(logits, axis=-1, keepdims=True)
    e = jnp.exp(logits - m)                        # padding lanes -> exactly 0
    denom = jnp.sum(e, axis=-1, keepdims=True)
    probs = e / denom                              # exact reciprocal: rows sum to 1

    # Store only the real action columns (block last dim == full array last dim).
    # Static slice 0:out_dim stays inside the first (8,128) tile -> no extra copy.
    o_ref[...] = probs[:, : o_ref.shape[-1]].astype(o_ref.dtype)


@functools.partial(jax.jit, static_argnames=("out_dim", "block_rows"))
def _policy_forward_padded(x, w1t, b1r, w2t, b2r, w3t_pad, b3r_pad, *,
                           out_dim, block_rows):
    B, in_dim = x.shape
    out_pad = w3t_pad.shape[1]

    # Choose the number of batch tiles g so TB (a multiple of 8) evenly covers B:
    #   * respect the block_rows cap,
    #   * use >= 2 grid steps when possible so v7x's 2 TensorCores both get work
    #     (extra ~0.35 us/step is noise on v5e/v6e).
    B8 = _round_up(B, 8)
    g = _cdiv(B8, block_rows)
    if B8 >= 16:
        g = max(g, 2)
    TB = _round_up(_cdiv(B8, g), 8)
    B_pad = g * TB
    if B_pad != B:
        x = jnp.pad(x, ((0, B_pad - B), (0, 0)))   # at most 8*g dead rows

    grid = (g,)

    def resident(shape):
        # Weights/biases: same block every grid step -> VMEM-resident, DMA'd once
        # (Pallas skips re-fetch when the mapped block index is unchanged).
        return pl.BlockSpec(shape, lambda i: tuple(0 for _ in shape))

    cost = pl.CostEstimate(
        flops=2 * B_pad * (in_dim * 64 + 64 * 64 + 64 * out_pad),
        transcendentals=B_pad * out_pad,
        bytes_accessed=(4 * B_pad * in_dim + 4 * B_pad * out_dim
                        + 2 * (in_dim * 64 + 64 * 64 + 64 * out_pad)
                        + 4 * (64 + 64 + out_pad)),
    )

    out = pl.pallas_call(
        _policy_kernel,
        out_shape=jax.ShapeDtypeStruct((B_pad, out_dim), jnp.float32),
        grid=grid,
        in_specs=[
            pl.BlockSpec((TB, in_dim), lambda i: (i, 0)),   # x: tiled over batch
            resident(w1t.shape),
            resident(b1r.shape),
            resident(w2t.shape),
            resident(b2r.shape),
            resident(w3t_pad.shape),
            resident(b3r_pad.shape),
        ],
        # Narrow (out_dim-wide) output: masked stores, but up to 32x fewer HBM
        # write bytes than the old 128-wide f32 slab, and no wrapper lane-slice.
        out_specs=pl.BlockSpec((TB, out_dim), lambda i: (i, 0)),
        compiler_params=pltpu.CompilerParams(
            dimension_semantics=("parallel",),
        ),
        cost_estimate=cost,
    )(x, w1t, b1r, w2t, b2r, w3t_pad, b3r_pad)

    return out[:B] if B_pad != B else out


def prepare_params(w1, b1, w2, b2, w3, b3, out_pad=LANE):
    """One-time param prep (hoisted out of the per-call path):
    PyTorch (out, in) weights -> (in, out) bf16; final layer lane-padded to
    `out_pad` columns with zero weights and -1e30 bias so softmax is unchanged."""
    out_dim = w3.shape[0]
    assert out_dim <= out_pad, "lane-padding scheme assumes out_dim <= 128"
    w1t = w1.T.astype(jnp.bfloat16)                                   # (in, 64)
    w2t = w2.T.astype(jnp.bfloat16)                                   # (64, 64)
    w3t = jnp.zeros((w3.shape[1], out_pad), jnp.bfloat16)
    w3t = w3t.at[:, :out_dim].set(w3.T.astype(jnp.bfloat16))          # (64, 128)
    b1r = b1.reshape(1, -1).astype(jnp.float32)                       # (1, 64)
    b2r = b2.reshape(1, -1).astype(jnp.float32)                       # (1, 64)
    b3r = jnp.full((1, out_pad), _NEG_PAD, jnp.float32)
    b3r = b3r.at[:, :out_dim].set(b3.astype(jnp.float32))             # (1, 128)
    return (w1t, b1r, w2t, b2r, w3t, b3r), out_dim


def policy_net_forward(x, params, out_dim, block_rows=2048):
    w1t, b1r, w2t, b2r, w3t, b3r = params
    return _policy_forward_padded(x, w1t, b1r, w2t, b2r, w3t, b3r,
                                  out_dim=out_dim, block_rows=block_rows)


def init_linear_params(key, in_features, out_features):
    """Deterministic PyTorch-like init: U(-1/sqrt(in), 1/sqrt(in)) for W and b."""
    kw, kb = jax.random.split(key)
    bound = 1.0 / jnp.sqrt(jnp.array(in_features, jnp.float32))
    w = jax.random.uniform(kw, (out_features, in_features), jnp.float32, -bound, bound)
    b = jax.random.uniform(kb, (out_features,), jnp.float32, -bound, bound)
    return w, b


if __name__ == "__main__":
    input_dim = 8
    output_dim = 4
    batch = 8

    key = jax.random.PRNGKey(0)
    kx, k1, k2, k3 = jax.random.split(key, 4)

    x = jax.random.normal(kx, (batch, input_dim), jnp.float32)
    w1, b1 = init_linear_params(k1, input_dim, 64)
    w2, b2 = init_linear_params(k2, 64, 64)
    w3, b3 = init_linear_params(k3, 64, output_dim)

    params, out_dim = prepare_params(w1, b1, w2, b2, w3, b3)
    probs = policy_net_forward(x, params, out_dim)
    jax.block_until_ready(probs)

    # Plain-JAX f32 reference of the same forward.
    def ref_forward(x):
        h1 = jnp.maximum(x @ w1.T + b1, 0.0)
        h2 = jnp.maximum(h1 @ w2.T + b2, 0.0)
        return jax.nn.softmax(h2 @ w3.T + b3, axis=-1)

    ref = ref_forward(x)
    assert probs.shape == (batch, output_dim)
    assert bool(jnp.all(jnp.isfinite(probs)))
    # bf16 matmuls (f32 accumulation): modest tolerance vs f32 reference.
    assert jnp.allclose(probs, ref, atol=2e-2, rtol=2e-2), float(jnp.max(jnp.abs(probs - ref)))
    # Exact softmax normalization: rows sum to 1 to f32 rounding.
    assert jnp.allclose(jnp.sum(probs, axis=-1), 1.0, atol=1e-5)

    # Second call with a non-multiple-of-8, >16 batch exercises the 2-tile path.
    x2 = jax.random.normal(kx, (37, input_dim), jnp.float32)
    probs2 = policy_net_forward(x2, params, out_dim)
    jax.block_until_ready(probs2)
    assert probs2.shape == (37, output_dim)
    assert jnp.allclose(probs2, ref_forward(x2), atol=2e-2, rtol=2e-2)

    print("KERNEL_OK")
</pallas_src>

<mosaic_0001>
module attributes {stable_mosaic.version = 11 : i64} {
  func.func @_policy_kernel(%arg0: i32, %arg1: memref<8x8xf32, #tpu.memory_space<vmem>>, %arg2: memref<8x64xbf16, #tpu.memory_space<vmem>>, %arg3: memref<1x64xf32, #tpu.memory_space<vmem>>, %arg4: memref<64x64xbf16, #tpu.memory_space<vmem>>, %arg5: memref<1x64xf32, #tpu.memory_space<vmem>>, %arg6: memref<64x128xbf16, #tpu.memory_space<vmem>>, %arg7: memref<1x128xf32, #tpu.memory_space<vmem>>, %arg8: memref<8x4xf32, #tpu.memory_space<vmem>>) attributes {dimension_semantics = [#tpu.dimension_semantics<parallel>], iteration_bounds = array<i64: 1>, scalar_prefetch = 0 : i64, scratch_operands = 0 : i64, tpu.core_type = #tpu.core_type<tc>, window_params = [{transform_indices = @transform_0, window_bounds = array<i64: 8, 8>}, {pipeline_mode = #tpu.pipeline_mode<synchronous>, transform_indices = @transform_1, window_bounds = array<i64: 8, 64>}, {pipeline_mode = #tpu.pipeline_mode<synchronous>, transform_indices = @transform_2, window_bounds = array<i64: 1, 64>}, {pipeline_mode = #tpu.pipeline_mode<synchronous>, transform_indices = @transform_3, window_bounds = array<i64: 64, 64>}, {pipeline_mode = #tpu.pipeline_mode<synchronous>, transform_indices = @transform_4, window_bounds = array<i64: 1, 64>}, {pipeline_mode = #tpu.pipeline_mode<synchronous>, transform_indices = @transform_5, window_bounds = array<i64: 64, 128>}, {pipeline_mode = #tpu.pipeline_mode<synchronous>, transform_indices = @transform_6, window_bounds = array<i64: 1, 128>}, {transform_indices = @transform_7, window_bounds = array<i64: 8, 4>}]} {
    %c0 = arith.constant 0 : index
    %c0_0 = arith.constant 0 : index
    %0 = vector.load %arg1[%c0, %c0_0] : memref<8x8xf32, #tpu.memory_space<vmem>>, vector<8x8xf32>
    %1 = arith.truncf %0 : vector<8x8xf32> to vector<8x8xbf16>
    %c0_1 = arith.constant 0 : index
    %c0_2 = arith.constant 0 : index
    %2 = vector.load %arg2[%c0_1, %c0_2] : memref<8x64xbf16, #tpu.memory_space<vmem>>, vector<8x64xbf16>
    %cst = arith.constant dense<0.000000e+00> : vector<8x64xf32>
    %3 = tpu.matmul %1, %2, %cst {dimension_numbers = #tpu.dot_dimension_numbers<[1], [0], [0], [1], [0, 0, 1, 1], [], []>} : vector<8x8xbf16>, vector<8x64xbf16>, vector<8x64xf32> -> vector<8x64xf32>
    %c0_3 = arith.constant 0 : index
    %c0_4 = arith.constant 0 : index
    %4 = vector.load %arg3[%c0_3, %c0_4] : memref<1x64xf32, #tpu.memory_space<vmem>>, vector<1x64xf32>
    %5 = vector.broadcast %4 : vector<1x64xf32> to vector<8x64xf32>
    %6 = arith.addf %3, %5 : vector<8x64xf32>
    %cst_5 = arith.constant 0.000000e+00 : f32
    %7 = vector.broadcast %cst_5 : f32 to vector<8x64xf32>
    %8 = arith.maximumf %6, %7 : vector<8x64xf32>
    %9 = arith.truncf %8 : vector<8x64xf32> to vector<8x64xbf16>
    %c0_6 = arith.constant 0 : index
    %c0_7 = arith.constant 0 : index
    %10 = vector.load %arg4[%c0_6, %c0_7] : memref<64x64xbf16, #tpu.memory_space<vmem>>, vector<64x64xbf16>
    %cst_8 = arith.constant dense<0.000000e+00> : vector<8x64xf32>
    %11 = tpu.matmul %9, %10, %cst_8 {dimension_numbers = #tpu.dot_dimension_numbers<[1], [0], [0], [1], [0, 0, 1, 1], [], []>} : vector<8x64xbf16>, vector<64x64xbf16>, vector<8x64xf32> -> vector<8x64xf32>
    %c0_9 = arith.constant 0 : index
    %c0_10 = arith.constant 0 : index
    %12 = vector.load %arg5[%c0_9, %c0_10] : memref<1x64xf32, #tpu.memory_space<vmem>>, vector<1x64xf32>
    %13 = vector.broadcast %12 : vector<1x64xf32> to vector<8x64xf32>
    %14 = arith.addf %11, %13 : vector<8x64xf32>
    %cst_11 = arith.constant 0.000000e+00 : f32
    %15 = vector.broadcast %cst_11 : f32 to vector<8x64xf32>
    %16 = arith.maximumf %14, %15 : vector<8x64xf32>
    %17 = arith.truncf %16 : vector<8x64xf32> to vector<8x64xbf16>
    %c0_12 = arith.constant 0 : index
    %c0_13 = arith.constant 0 : index
    %18 = vector.load %arg6[%c0_12, %c0_13] : memref<64x128xbf16, #tpu.memory_space<vmem>>, vector<64x128xbf16>
    %cst_14 = arith.constant dense<0.000000e+00> : vector<8x128xf32>
    %19 = tpu.matmul %17, %18, %cst_14 {dimension_numbers = #tpu.dot_dimension_numbers<[1], [0], [0], [1], [0, 0, 1, 1], [], []>} : vector<8x64xbf16>, vector<64x128xbf16>, vector<8x128xf32> -> vector<8x128xf32>
    %c0_15 = arith.constant 0 : index
    %c0_16 = arith.constant 0 : index
    %20 = vector.load %arg7[%c0_15, %c0_16] : memref<1x128xf32, #tpu.memory_space<vmem>>, vector<1x128xf32>
    %21 = vector.broadcast %20 : vector<1x128xf32> to vector<8x128xf32>
    %22 = arith.addf %19, %21 : vector<8x128xf32>
    %cst_17 = arith.constant dense<0xFF800000> : vector<8xf32>
    %23 = vector.multi_reduction <maximumf>, %22, %cst_17 [1] : vector<8x128xf32> to vector<8xf32>
    %24 = vector.shape_cast %23 : vector<8xf32> to vector<8x1xf32>
    %25 = vector.broadcast %24 : vector<8x1xf32> to vector<8x128xf32>
    %26 = arith.subf %22, %25 : vector<8x128xf32>
    %27 = math.exp %26 : vector<8x128xf32>
    %cst_18 = arith.constant dense<0.000000e+00> : vector<8xf32>
    %28 = vector.multi_reduction <add>, %27, %cst_18 [1] : vector<8x128xf32> to vector<8xf32>
    %29 = vector.shape_cast %28 : vector<8xf32> to vector<8x1xf32>
    %30 = vector.broadcast %29 : vector<8x1xf32> to vector<8x128xf32>
    %31 = arith.divf %27, %30 : vector<8x128xf32>
    %32 = vector.extract_strided_slice %31 {offsets = [0, 0], sizes = [8, 4], strides = [1, 1]} : vector<8x128xf32> to vector<8x4xf32>
    %c0_19 = arith.constant 0 : index
    %c0_20 = arith.constant 0 : index
    %33 = vector.load %arg8[%c0_19, %c0_20] : memref<8x4xf32, #tpu.memory_space<vmem>>, vector<8x4xf32>
    tpu.vector_store %arg8[%c0_19, %c0_20], %32 {strides = array<i32>} : memref<8x4xf32, #tpu.memory_space<vmem>>, vector<8x4xf32>,
    return
  }
  func.func @transform_0(%arg0: i32) -> (i32, i32) {
    %c0_i32 = arith.constant 0 : i32
    %c0_i32_0 = arith.constant 0 : i32
    return %arg0, %c0_i32 : i32, i32
  }
  func.func @transform_1(%arg0: i32) -> (i32, i32) {
    %c0_i32 = arith.constant 0 : i32
    %c0_i32_0 = arith.constant 0 : i32
    %c0_i32_1 = arith.constant 0 : i32
    return %c0_i32, %c0_i32_0 : i32, i32
  }
  func.func @transform_2(%arg0: i32) -> (i32, i32) {
    %c0_i32 = arith.constant 0 : i32
    %c0_i32_0 = arith.constant 0 : i32
    %c0_i32_1 = arith.constant 0 : i32
    return %c0_i32, %c0_i32_0 : i32, i32
  }
  func.func @transform_3(%arg0: i32) -> (i32, i32) {
    %c0_i32 = arith.constant 0 : i32
    %c0_i32_0 = arith.constant 0 : i32
    %c0_i32_1 = arith.constant 0 : i32
    return %c0_i32, %c0_i32_0 : i32, i32
  }
  func.func @transform_4(%arg0: i32) -> (i32, i32) {
    %c0_i32 = arith.constant 0 : i32
    %c0_i32_0 = arith.constant 0 : i32
    %c0_i32_1 = arith.constant 0 : i32
    return %c0_i32, %c0_i32_0 : i32, i32
  }
  func.func @transform_5(%arg0: i32) -> (i32, i32) {
    %c0_i32 = arith.constant 0 : i32
    %c0_i32_0 = arith.constant 0 : i32
    %c0_i32_1 = arith.constant 0 : i32
    return %c0_i32, %c0_i32_0 : i32, i32
  }
  func.func @transform_6(%arg0: i32) -> (i32, i32) {
    %c0_i32 = arith.constant 0 : i32
    %c0_i32_0 = arith.constant 0 : i32
    %c0_i32_1 = arith.constant 0 : i32
    return %c0_i32, %c0_i32_0 : i32, i32
  }
  func.func @transform_7(%arg0: i32) -> (i32, i32) {
    %c0_i32 = arith.constant 0 : i32
    %c0_i32_0 = arith.constant 0 : i32
    return %arg0, %c0_i32 : i32, i32
  }
}

</mosaic_0001>

<llo_original>
// kernel: _policy_forward_padded.1
$region0: #{_policy_forward_padded.1}
  #allocation0 [shape = 'u32[]', space=smem, size = 0x4, offset = 0x4, fixed_abs, tag = 'smem constant byte address 0x4 - core index']
  #allocation1 [shape = 'u32[144,128]{1,0:T(1,128)}', space=vmem, size = 0x12000, scoped, tag = 'internal scratch']
  %s0 = inlined_call_operand.hbm [shape: f32[8,8], index: 0, kind: input, shape index: {}]
  %s1 = inlined_call_operand.hbm [shape: bf16[8,64], index: 1, kind: input, shape index: {}]
  %s2 = inlined_call_operand.vmem [shape: f32[1,64], index: 2, kind: input, shape index: {}]
  %s3 = inlined_call_operand.hbm [shape: bf16[64,64], index: 3, kind: input, shape index: {}]
  %s4 = inlined_call_operand.vmem [shape: f32[1,64], index: 4, kind: input, shape index: {}]
  %s5 = inlined_call_operand.hbm [shape: bf16[64,128], index: 5, kind: input, shape index: {}]
  %s6 = inlined_call_operand.vmem [shape: f32[1,128], index: 6, kind: input, shape index: {}]
  %s7 = inlined_call_operand.vmem [shape: f32[8,4], index: 7, kind: output, shape index: {}]
  %s8 = sld [smem:[#allocation0]]
  $region54: #{_policy_forward_padded.1} parent=0
    _
  %s10 = ssub.s32 1, %s8
  %s11 = scalar_select 0, %s10, %s8
  $region1: #{_policy_forward_padded.1} parent=0
    #allocation2 [shape = 'u8[4096]{0}', space=vmem, size = 0x1000, scoped, tag = 'input window, operand 0, single buffered']
    #allocation3 [shape = 's32[1]{0}', space=sflag, size = 0x4, scoped, tag = 'scoped memory for _policy_forward_padded.1']
    #allocation4 [shape = 'u8[2048]{0}', space=vmem, size = 0x800, scoped, tag = 'input window, operand 1, single buffered']
    #allocation5 [shape = 's32[1]{0}', space=sflag, size = 0x4, scoped, tag = 'scoped memory for _policy_forward_padded.1']
    #allocation6 [shape = 'u8[16384]{0}', space=vmem, size = 0x4000, scoped, tag = 'input window, operand 3, single buffered']
    #allocation7 [shape = 'u8[16384]{0}', space=vmem, size = 0x4000, scoped, tag = 'input window, operand 5, single buffered']
    #allocation8 [shape = 's32[1]{0}', space=sflag, size = 0x4, scoped, tag = 'scoped memory for _policy_forward_padded.1']
    %12 = vsyncpa [#allocation3], 0
    %13 = vsyncpa [#allocation5], 0
    %14 = vsyncpa [#allocation8], 0
    // Predicated region
    $region2: #{_policy_forward_padded.1} parent=1 // pred_check
      _
    $region3: #{_policy_forward_padded.1} parent=1 // pred_check_branch
      %16 = sbr.rel (0) target = $region5
    $region4: #{_policy_forward_padded.1} parent=1 // pred_region
      %s18 = ssub.s32 128, 128
      %19 = vsyncadd [#allocation3], %s18
      %s21 = sshll.u32 [#allocation2], 4
      %s22 = int_to_ptr.vmem [resolvable:$true] %s21
      %24 = dma.hbm_to_vmem [thread:$0]  %s0, 128, %s22, [#allocation3]
    $region5: #{_policy_forward_padded.1} parent=1 // pred_fallthru
      _
    // Predicated region
    $region6: #{_policy_forward_padded.1} parent=1 // pred_check
      _
    $region7: #{_policy_forward_padded.1} parent=1 // pred_check_branch
      %26 = sbr.rel (0) target = $region9
    $region8: #{_policy_forward_padded.1} parent=1 // pred_region
      %s28 = ssub.s32 64, 64
      %29 = vsyncadd [#allocation5], %s28
      %s31 = sshll.u32 [#allocation4], 4
      %s32 = int_to_ptr.vmem [resolvable:$true] %s31
      %34 = dma.hbm_to_vmem [thread:$0]  %s1, 64, %s32, [#allocation5]
    $region9: #{_policy_forward_padded.1} parent=1 // pred_fallthru
      _
    // Predicated region
    $region10: #{_policy_forward_padded.1} parent=1 // pred_check
      _
    $region11: #{_policy_forward_padded.1} parent=1 // pred_check_branch
      %36 = sbr.rel (0) target = $region13
    $region12: #{_policy_forward_padded.1} parent=1 // pred_region
      _
    $region13: #{_policy_forward_padded.1} parent=1 // pred_fallthru
      _
    // Predicated region
    $region14: #{_policy_forward_padded.1} parent=1 // pred_check
      _
    $region15: #{_policy_forward_padded.1} parent=1 // pred_check_branch
      %38 = sbr.rel (0) target = $region17
    $region16: #{_policy_forward_padded.1} parent=1 // pred_region
      %s40 = ssub.s32 512, 512
      %41 = vsyncadd [#allocation5], %s40
      %s42 = sshll.u32 [#allocation6], 4
      %s43 = int_to_ptr.vmem [resolvable:$true] %s42
      %48 = dma.hbm_to_vmem [thread:$0]  %s3, 512, %s43, [#allocation5], 64, 64, 4
    $region17: #{_policy_forward_padded.1} parent=1 // pred_fallthru
      _
    // Predicated region
    $region18: #{_policy_forward_padded.1} parent=1 // pred_check
      _
    $region19: #{_policy_forward_padded.1} parent=1 // pred_check_branch
      %50 = sbr.rel (0) target = $region21
    $region20: #{_policy_forward_padded.1} parent=1 // pred_region
      _
    $region21: #{_policy_forward_padded.1} parent=1 // pred_fallthru
      _
    // Predicated region
    $region22: #{_policy_forward_padded.1} parent=1 // pred_check
      _
    $region23: #{_policy_forward_padded.1} parent=1 // pred_check_branch
      %52 = sbr.rel (0) target = $region25
    $region24: #{_policy_forward_padded.1} parent=1 // pred_region
      %s54 = ssub.s32 512, 512
      %55 = vsyncadd [#allocation8], %s54
      %s56 = sshll.u32 [#allocation7], 4
      %s57 = int_to_ptr.vmem [resolvable:$true] %s56
      %62 = dma.hbm_to_vmem [thread:$0]  %s5, 512, %s57, [#allocation8], 64, 64, 4
    $region25: #{_policy_forward_padded.1} parent=1 // pred_fallthru
      _
    // Predicated region
    $region26: #{_policy_forward_padded.1} parent=1 // pred_check
      _
    $region27: #{_policy_forward_padded.1} parent=1 // pred_check_branch
      %64 = sbr.rel (0) target = $region29
    $region28: #{_policy_forward_padded.1} parent=1 // pred_region
      _
    $region29: #{_policy_forward_padded.1} parent=1 // pred_fallthru
      _
    // Predicated region
    $region30: #{_policy_forward_padded.1} parent=1 // pred_check
      _
    $region31: #{_policy_forward_padded.1} parent=1 // pred_check_branch
      %66 = sbr.rel (0) target = $region33
    $region32: #{_policy_forward_padded.1} parent=1 // pred_region
      %67 = dma.done [#allocation3], 128
    $region33: #{_policy_forward_padded.1} parent=1 // pred_fallthru
      _
    // Predicated region
    $region34: #{_policy_forward_padded.1} parent=1 // pred_check
      _
    $region35: #{_policy_forward_padded.1} parent=1 // pred_check_branch
      %69 = sbr.rel (0) target = $region37
    $region36: #{_policy_forward_padded.1} parent=1 // pred_region
      %70 = dma.done [#allocation5], 64
    $region37: #{_policy_forward_padded.1} parent=1 // pred_fallthru
      _
    // Predicated region
    $region38: #{_policy_forward_padded.1} parent=1 // pred_check
      _
    $region39: #{_policy_forward_padded.1} parent=1 // pred_check_branch
      %72 = sbr.rel (0) target = $region41
    $region40: #{_policy_forward_padded.1} parent=1 // pred_region
      %73 = dma.done [#allocation5], 512
    $region41: #{_policy_forward_padded.1} parent=1 // pred_fallthru
      _
    // Predicated region
    $region42: #{_policy_forward_padded.1} parent=1 // pred_check
      _
    $region43: #{_policy_forward_padded.1} parent=1 // pred_check_branch
      %75 = sbr.rel (0) target = $region45
    $region44: #{_policy_forward_padded.1} parent=1 // pred_region
      %76 = dma.done [#allocation8], 512
    $region45: #{_policy_forward_padded.1} parent=1 // pred_fallthru
      _
    %v78 = vld [vmem:[#allocation2] sm:$0xff]
    %v79 = vpack.c.bf16 %v78, %v78
    %v80 = vld [vmem:[#allocation4] sm:$0xf]
    %v81 = vld [vmem:[%s2] sm:$0x1]
    %v83 = vlaneseq
    %v84 = vshrl.u32 %v83, 7
    %v85 = vsub.s32 0, %v84
    %v86 = vrot.slane %v81, %v85
    %vm88 = vcmask 64512
    %v90 = vsel %vm88, %v79, 0
    %vm92 = vcmask 1043456
    %v94 = vsel %vm92, %v80, 0
    %96 = vmatprep.subr.bf16.mxu0 0
    %97 = vmatpush1.bf16.msra.mxu0 0
    %98 = vmatprep.subr.bf16.mxu0 0
    %99 = vmatpush1.bf16.msra.mxu0 0
    %100 = vmatprep.subr.bf16.mxu0 0
    %101 = vmatpush1.bf16.msra.mxu0 0
    %102 = vmatprep.subr.bf16.mxu0 0
    %103 = vmatpush1.bf16.msra.mxu0 0
    %104 = vmatprep.subr.bf16.mxu0 0
    %105 = vmatpush1.bf16.msra.mxu0 0
    %106 = vmatprep.subr.bf16.mxu0 0
    %107 = vmatpush1.bf16.msra.mxu0 0
    %108 = vmatprep.subr.bf16.mxu0 0
    %109 = vmatpush1.bf16.msra.mxu0 0
    %110 = vmatprep.subr.bf16.mxu0 0
    %111 = vmatpush1.bf16.msra.mxu0 %v94
    %112 = vmatprep.subr.bf16.mxu0 0
    %113 = vmatpush2.bf16.msra.mxu0 0
    %114 = vmatprep.subr.bf16.mxu0 0
    %115 = vmatpush2.bf16.msra.mxu0 0
    %116 = vmatprep.subr.bf16.mxu0 0
    %117 = vmatpush2.bf16.msra.mxu0 0
    %118 = vmatprep.subr.bf16.mxu0 0
    %119 = vmatpush2.bf16.msra.mxu0 0
    %120 = vmatprep.subr.bf16.mxu0 0
    %121 = vmatpush2.bf16.msra.mxu0 0
    %122 = vmatprep.subr.bf16.mxu0 0
    %123 = vmatpush2.bf16.msra.mxu0 0
    %124 = vmatprep.subr.bf16.mxu0 0
    %125 = vmatpush2.bf16.msra.mxu0 0
    %126 = vmatprep.subr.bf16.mxu0 0
    %127 = vmatpush2.bf16.msra.mxu0 0
    %128 = vmatprep.mubr.bf16.mxu0 0
    %129 = vmatmul.mubr.bf16.gmra.mxu0 %v90
    %v130 = vpop.f32.mrf.mxu0
    %v131 = vadd.f32 %v86, %v130
    %v132 = vpop.f32.mrf.mxu0
    %v133 = vpop.f32.mrf.mxu0
    %v134 = vpop.f32.mrf.mxu0
    %135 = vdwg.mxu0
    %v136 = vmax.f32 %v131, 0.0
    %v137 = vpack.c.bf16 %v136, %v136
    %v138 = vld [vmem:[#allocation6] sm:$0xf]
    %v139 = vld [vmem:[#allocation6 + $0x4] sm:$0xf]
    %v140 = vld [vmem:[#allocation6 + $0x8] sm:$0xf]
    %v141 = vld [vmem:[#allocation6 + $0xc] sm:$0xf]
    %v142 = vld [vmem:[#allocation6 + $0x10] sm:$0xf]
    %v143 = vld [vmem:[#allocation6 + $0x14] sm:$0xf]
    %v144 = vld [vmem:[#allocation6 + $0x18] sm:$0xf]
    %v145 = vld [vmem:[#allocation6 + $0x1c] sm:$0xf]
    %v146 = vld [vmem:[%s4] sm:$0x1]
    %v148 = vlaneseq
    %v149 = vshrl.u32 %v148, 7
    %v150 = vsub.s32 0, %v149
    %v151 = vrot.slane %v146, %v150
    %v161 = vunpack.c.l.b16 %v138
    %v162 = vunpack.c.l.b16 %v139
    %v163 = vunpack.c.l.b16 %v140
    %v164 = vunpack.c.l.b16 %v141
    %v165 = vunpack.c.l.b16 %v142
    %v166 = vunpack.c.l.b16 %v143
    %v167 = vunpack.c.l.b16 %v144
    %v168 = vunpack.c.l.b16 %v145
    %v169 = vpack.c.b16 %v162, %v161
    %v170 = vpack.c.b16 %v164, %v163
    %v171 = vpack.c.b16 %v166, %v165
    %v172 = vpack.c.b16 %v168, %v167
    %vm177 = vcmask 523264
    %v179 = vsel %vm177, %v137, 0
    %181 = vmatprep.subr.bf16.mxu0 0
    %182 = vmatpush1.bf16.msra.mxu0 0
    %183 = vmatprep.subr.bf16.mxu0 0
    %184 = vmatpush1.bf16.msra.mxu0 0
    %185 = vmatprep.subr.bf16.mxu0 0
    %186 = vmatpush1.bf16.msra.mxu0 0
    %187 = vmatprep.subr.bf16.mxu0 0
    %188 = vmatpush1.bf16.msra.mxu0 0
    %189 = vmatprep.subr.bf16.mxu0 0
    %190 = vmatpush1.bf16.msra.mxu0 %v172
    %191 = vmatprep.subr.bf16.mxu0 0
    %192 = vmatpush1.bf16.msra.mxu0 %v171
    %193 = vmatprep.subr.bf16.mxu0 0
    %194 = vmatpush1.bf16.msra.mxu0 %v170
    %195 = vmatprep.subr.bf16.mxu0 0
    %196 = vmatpush1.bf16.msra.mxu0 %v169
    %197 = vmatprep.subr.bf16.mxu0 0
    %198 = vmatpush2.bf16.msra.mxu0 0
    %199 = vmatprep.subr.bf16.mxu0 0
    %200 = vmatpush2.bf16.msra.mxu0 0
    %201 = vmatprep.subr.bf16.mxu0 0
    %202 = vmatpush2.bf16.msra.mxu0 0
    %203 = vmatprep.subr.bf16.mxu0 0
    %204 = vmatpush2.bf16.msra.mxu0 0
    %205 = vmatprep.subr.bf16.mxu0 0
    %206 = vmatpush2.bf16.msra.mxu0 0
    %207 = vmatprep.subr.bf16.mxu0 0
    %208 = vmatpush2.bf16.msra.mxu0 0
    %209 = vmatprep.subr.bf16.mxu0 0
    %210 = vmatpush2.bf16.msra.mxu0 0
    %211 = vmatprep.subr.bf16.mxu0 0
    %212 = vmatpush2.bf16.msra.mxu0 0
    %213 = vmatprep.mubr.bf16.mxu0 0
    %214 = vmatmul.mubr.bf16.gmra.mxu0 %v179
    %v215 = vpop.f32.mrf.mxu0
    %v216 = vadd.f32 %v151, %v215
    %v217 = vpop.f32.mrf.mxu0
    %v218 = vpop.f32.mrf.mxu0
    %v219 = vpop.f32.mrf.mxu0
    %220 = vdwg.mxu0
    %v221 = vmax.f32 %v216, 0.0
    %v222 = vpack.c.bf16 %v221, %v221
    %v223 = vld [vmem:[#allocation7] sm:$0xf]
    %v224 = vld [vmem:[#allocation7 + $0x4] sm:$0xf]
    %v225 = vld [vmem:[#allocation7 + $0x8] sm:$0xf]
    %v226 = vld [vmem:[#allocation7 + $0xc] sm:$0xf]
    %v227 = vld [vmem:[#allocation7 + $0x10] sm:$0xf]
    %v228 = vld [vmem:[#allocation7 + $0x14] sm:$0xf]
    %v229 = vld [vmem:[#allocation7 + $0x18] sm:$0xf]
    %v230 = vld [vmem:[#allocation7 + $0x1c] sm:$0xf]
    %v231 = vld [vmem:[%s6] sm:$0x1]
    %v233 = vlaneseq
    %v234 = vshrl.u32 %v233, 7
    %v235 = vsub.s32 0, %v234
    %v236 = vrot.slane %v231, %v235
    %v246 = vunpack.c.l.b16 %v223
    %v247 = vunpack.c.l.b16 %v224
    %v248 = vunpack.c.l.b16 %v225
    %v249 = vunpack.c.l.b16 %v226
    %v250 = vunpack.c.l.b16 %v227
    %v251 = vunpack.c.l.b16 %v228
    %v252 = vunpack.c.l.b16 %v229
    %v253 = vunpack.c.l.b16 %v230
    %v254 = vpack.c.b16 %v247, %v246
    %v255 = vpack.c.b16 %v249, %v248
    %v256 = vpack.c.b16 %v251, %v250
    %v257 = vpack.c.b16 %v253, %v252
    %v263 = vsel %vm177, %v222, 0
    %265 = vmatprep.subr.bf16.mxu0 0
    %266 = vmatpush1.bf16.msra.mxu0 0
    %267 = vmatprep.subr.bf16.mxu0 0
    %268 = vmatpush1.bf16.msra.mxu0 0
    %269 = vmatprep.subr.bf16.mxu0 0
    %270 = vmatpush1.bf16.msra.mxu0 0
    %271 = vmatprep.subr.bf16.mxu0 0
    %272 = vmatpush1.bf16.msra.mxu0 0
    %273 = vmatprep.subr.bf16.mxu0 0
    %274 = vmatpush1.bf16.msra.mxu0 %v257
    %275 = vmatprep.subr.bf16.mxu0 0
    %276 = vmatpush1.bf16.msra.mxu0 %v256
    %277 = vmatprep.subr.bf16.mxu0 0
    %278 = vmatpush1.bf16.msra.mxu0 %v255
    %279 = vmatprep.subr.bf16.mxu0 0
    %280 = vmatpush1.bf16.msra.mxu0 %v254
    %281 = vmatprep.subr.bf16.mxu0 0
    %282 = vmatpush2.bf16.msra.mxu0 0
    %283 = vmatprep.subr.bf16.mxu0 0
    %284 = vmatpush2.bf16.msra.mxu0 0
    %285 = vmatprep.subr.bf16.mxu0 0
    %286 = vmatpush2.bf16.msra.mxu0 0
    %287 = vmatprep.subr.bf16.mxu0 0
    %288 = vmatpush2.bf16.msra.mxu0 0
    %289 = vmatprep.subr.bf16.mxu0 0
    %290 = vmatpush2.bf16.msra.mxu0 0
    %291 = vmatprep.subr.bf16.mxu0 0
    %292 = vmatpush2.bf16.msra.mxu0 0
    %293 = vmatprep.subr.bf16.mxu0 0
    %294 = vmatpush2.bf16.msra.mxu0 0
    %295 = vmatprep.subr.bf16.mxu0 0
    %296 = vmatpush2.bf16.msra.mxu0 0
    %297 = vmatprep.mubr.bf16.mxu0 0
    %298 = vmatmul.mubr.bf16.gmra.mxu0 %v263
    %v299 = vpop.f32.mrf.mxu0
    %v300 = vadd.f32 %v236, %v299
    %v301 = vpop.f32.mrf.mxu0
    %v302 = vpop.f32.mrf.mxu0
    %v303 = vpop.f32.mrf.mxu0
    %304 = vdwg.mxu0
    %305 = vmax.xlane.f32.xlu0 %v300
    %v306 = vpop.xlane.xlu0 %305
    %v307 = vsub.f32 %v300, %v306
    %v308 = vmul.f32 %v307, 1.442695
    %v309 = vpow.pop %v308
    %310 = vadd.xlane.f32.xlu0 %v309
    %v311 = vpop.xlane.xlu0 %310
    %v312 = vrcp.pop %v311
    %v313 = vmul.f32 %v309, %v312
    %vm314 = vcmask 31744
    %315 = vst.msk [vmem:[%s7] sm:$0xff] %vm314, %v313
    // Predicated region
    $region46: #{_policy_forward_padded.1} parent=1 // pred_check
      _
    $region47: #{_policy_forward_padded.1} parent=1 // pred_check_branch
      %317 = sbr.rel (0) target = $region49
    $region48: #{_policy_forward_padded.1} parent=1 // pred_region
      _
    $region49: #{_policy_forward_padded.1} parent=1 // pred_fallthru
      _
    // Predicated region
    $region50: #{_policy_forward_padded.1} parent=1 // pred_check
      _
    $region51: #{_policy_forward_padded.1} parent=1 // pred_check_branch
      %319 = sbr.rel (0) target = $region53
    $region52: #{_policy_forward_padded.1} parent=1 // pred_region
      _
    $region53: #{_policy_forward_padded.1} parent=1 // pred_fallthru
      _
    %320 = vsyncpa [#allocation3], 1
    %321 = vsyncpa [#allocation5], 1
    %322 = vsyncpa [#allocation8], 1

</llo_original>
